<compile_context>
chip_gen: v7x
topology: tpu7x:2x2x1
jax: 0.10.0
libtpu: 0.0.40
codegen_flags: <defaults>
</compile_context>

<pallas_src>
import functools

import jax
import jax.numpy as jnp
from jax.experimental import pallas as pl
from jax.experimental.pallas import tpu as pltpu

BN_EPS = 1e-5


def _rotation_kernel(num_layers,
                     z_ref, c_ref, wpz_ref, wpc_ref, bp_ref,
                     wl_ref, gamma_ref, beta_ref,
                     o_ref):
    # Projection: split matmul (z part + landmarks part) replaces the concat.
    # bf16 MXU inputs, f32 accumulation; bias added in f32.
    x = (jnp.dot(z_ref[...].astype(jnp.bfloat16), wpz_ref[...],
                 preferred_element_type=jnp.float32)
         + jnp.dot(c_ref[...].astype(jnp.bfloat16), wpc_ref[...],
                   preferred_element_type=jnp.float32)
         + bp_ref[...])

    # num_layers is static -> unrolled Python loop over stacked layer params.
    for l in range(num_layers):
        # Linear bias intentionally omitted: batch-stat BatchNorm cancels it.
        h = jnp.dot(x.astype(jnp.bfloat16), wl_ref[l],
                    preferred_element_type=jnp.float32)
        # BatchNorm1d, training-mode batch statistics, biased variance (f32).
        mean = jnp.mean(h, axis=0, keepdims=True)
        d = h - mean
        var = jnp.mean(d * d, axis=0, keepdims=True)
        scale = gamma_ref[l] * jax.lax.rsqrt(var + BN_EPS)   # rsqrt -> EUP slot
        # Fused normalize + affine + ReLU: one mul + one add + one max per elem.
        x = jnp.maximum(d * scale + beta_ref[l], 0.0)

    o_ref[...] = x.astype(o_ref.dtype)


def prepare_params(params, *, latent_dim, num_layers):
    """One-time (outside the hot path) re-layout + bf16 cast of the weights.

    params follow the PyTorch (out, in) convention:
        w_proj : (latent_dim, latent_dim + landmarks_dim)
        b_proj : (latent_dim,)
        w_lin  : (L, latent_dim, latent_dim)
        b_lin  : (L, latent_dim)        # dropped: BN batch stats cancel it
        gamma  : (L, latent_dim)
        beta   : (L, latent_dim)
    """
    wp_t = jnp.transpose(params["w_proj"], (1, 0))          # (proj_dim, D)
    return {
        "wpz": wp_t[:latent_dim].astype(jnp.bfloat16),       # (D, D)
        "wpc": wp_t[latent_dim:].astype(jnp.bfloat16),       # (landmarks_dim, D)
        "bp": params["b_proj"].reshape(1, latent_dim).astype(jnp.float32),
        "wl": jnp.transpose(params["w_lin"], (0, 2, 1)).astype(jnp.bfloat16),
        "gamma": params["gamma"].reshape(num_layers, 1, latent_dim).astype(jnp.float32),
        "beta": params["beta"].reshape(num_layers, 1, latent_dim).astype(jnp.float32),
    }


def latent_code_rotation(z, c, prepped, *, num_layers):
    """
    z: (B, latent_dim) float32
    c: (B, n_landmarks, 2) float32
    prepped: output of prepare_params.
    """
    B, latent_dim = z.shape
    c_flat = c.reshape(B, -1)                                # metadata-only

    kernel = functools.partial(_rotation_kernel, num_layers)
    vmem = lambda: pl.BlockSpec(memory_space=pltpu.MemorySpace.VMEM)

    out = pl.pallas_call(
        kernel,
        out_shape=jax.ShapeDtypeStruct((B, latent_dim), jnp.float32),
        in_specs=[vmem() for _ in range(8)],
        out_specs=vmem(),
    )(z, c_flat,
      prepped["wpz"], prepped["wpc"], prepped["bp"],
      prepped["wl"], prepped["gamma"], prepped["beta"])
    return out


def _reference(z, c, params, *, num_layers):
    """Pure-JAX f32 reference mirroring the PyTorch forward (incl. biases)."""
    B = z.shape[0]
    zc = jnp.concatenate([z, c.reshape(B, -1)], axis=1)
    x = zc @ params["w_proj"].T + params["b_proj"]
    for l in range(num_layers):
        h = x @ params["w_lin"][l].T + params["b_lin"][l]
        mean = jnp.mean(h, axis=0, keepdims=True)
        var = jnp.mean((h - mean) ** 2, axis=0, keepdims=True)
        h = (h - mean) / jnp.sqrt(var + BN_EPS)
        h = h * params["gamma"][l] + params["beta"][l]
        x = jnp.maximum(h, 0.0)
    return x


def _init_params(key, latent_dim, landmarks_dim, num_layers):
    proj_dim = latent_dim + landmarks_dim
    keys = jax.random.split(key, 4)
    scale_p = 1.0 / jnp.sqrt(proj_dim)
    scale_l = 1.0 / jnp.sqrt(latent_dim)
    return {
        "w_proj": jax.random.uniform(keys[0], (latent_dim, proj_dim),
                                     jnp.float32, -scale_p, scale_p),
        "b_proj": jax.random.uniform(keys[1], (latent_dim,),
                                     jnp.float32, -scale_p, scale_p),
        "w_lin": jax.random.uniform(keys[2], (num_layers, latent_dim, latent_dim),
                                    jnp.float32, -scale_l, scale_l),
        "b_lin": jax.random.uniform(keys[3], (num_layers, latent_dim),
                                    jnp.float32, -scale_l, scale_l),
        "gamma": jnp.ones((num_layers, latent_dim), jnp.float32),
        "beta": jnp.zeros((num_layers, latent_dim), jnp.float32),
    }


if __name__ == "__main__":
    # Small shapes consistent with the forward: z (B, latent_dim), c (B, n_lm, 2).
    B = 16
    LATENT_DIM = 128
    N_LANDMARKS = 8
    LANDMARKS_DIM = N_LANDMARKS * 2
    NUM_LAYERS = 3

    root = jax.random.PRNGKey(0)
    k_z, k_c, k_p = jax.random.split(root, 3)

    z = jax.random.normal(k_z, (B, LATENT_DIM), jnp.float32)
    c = jax.random.normal(k_c, (B, N_LANDMARKS, 2), jnp.float32)
    params = _init_params(k_p, LATENT_DIM, LANDMARKS_DIM, NUM_LAYERS)
    prepped = prepare_params(params, latent_dim=LATENT_DIM, num_layers=NUM_LAYERS)

    out = latent_code_rotation(z, c, prepped, num_layers=NUM_LAYERS)
    out = jax.block_until_ready(out)

    ref = jax.block_until_ready(_reference(z, c, params, num_layers=NUM_LAYERS))
    assert out.shape == (B, LATENT_DIM)
    # bf16 matmul inputs (f32 accumulation) vs the pure-f32 reference: loosened
    # tolerance per the perf-review guidance.
    assert jnp.allclose(out, ref, atol=5e-2, rtol=5e-2), "mismatch vs reference"

    print("KERNEL_OK")
</pallas_src>

<mosaic_0001>
module attributes {stable_mosaic.version = 11 : i64} {
  func.func @_rotation_kernel(%arg0: memref<16x128xf32, #tpu.memory_space<vmem>>, %arg1: memref<16x16xf32, #tpu.memory_space<vmem>>, %arg2: memref<128x128xbf16, #tpu.memory_space<vmem>>, %arg3: memref<16x128xbf16, #tpu.memory_space<vmem>>, %arg4: memref<1x128xf32, #tpu.memory_space<vmem>>, %arg5: memref<3x128x128xbf16, #tpu.memory_space<vmem>>, %arg6: memref<3x1x128xf32, #tpu.memory_space<vmem>>, %arg7: memref<3x1x128xf32, #tpu.memory_space<vmem>>, %arg8: memref<16x128xf32, #tpu.memory_space<vmem>>) attributes {dimension_semantics = [], scalar_prefetch = 0 : i64, scratch_operands = 0 : i64, tpu.core_type = #tpu.core_type<tc>} {
    %c0 = arith.constant 0 : index
    %c0_0 = arith.constant 0 : index
    %0 = vector.load %arg0[%c0, %c0_0] : memref<16x128xf32, #tpu.memory_space<vmem>>, vector<16x128xf32>
    %1 = arith.truncf %0 : vector<16x128xf32> to vector<16x128xbf16>
    %c0_1 = arith.constant 0 : index
    %c0_2 = arith.constant 0 : index
    %2 = vector.load %arg2[%c0_1, %c0_2] : memref<128x128xbf16, #tpu.memory_space<vmem>>, vector<128x128xbf16>
    %cst = arith.constant dense<0.000000e+00> : vector<16x128xf32>
    %3 = tpu.matmul %1, %2, %cst {dimension_numbers = #tpu.dot_dimension_numbers<[1], [0], [0], [1], [0, 0, 1, 1], [], []>} : vector<16x128xbf16>, vector<128x128xbf16>, vector<16x128xf32> -> vector<16x128xf32>
    %c0_3 = arith.constant 0 : index
    %c0_4 = arith.constant 0 : index
    %4 = vector.load %arg1[%c0_3, %c0_4] : memref<16x16xf32, #tpu.memory_space<vmem>>, vector<16x16xf32>
    %5 = arith.truncf %4 : vector<16x16xf32> to vector<16x16xbf16>
    %c0_5 = arith.constant 0 : index
    %c0_6 = arith.constant 0 : index
    %6 = vector.load %arg3[%c0_5, %c0_6] : memref<16x128xbf16, #tpu.memory_space<vmem>>, vector<16x128xbf16>
    %cst_7 = arith.constant dense<0.000000e+00> : vector<16x128xf32>
    %7 = tpu.matmul %5, %6, %cst_7 {dimension_numbers = #tpu.dot_dimension_numbers<[1], [0], [0], [1], [0, 0, 1, 1], [], []>} : vector<16x16xbf16>, vector<16x128xbf16>, vector<16x128xf32> -> vector<16x128xf32>
    %8 = arith.addf %3, %7 : vector<16x128xf32>
    %c0_8 = arith.constant 0 : index
    %c0_9 = arith.constant 0 : index
    %9 = vector.load %arg4[%c0_8, %c0_9] : memref<1x128xf32, #tpu.memory_space<vmem>>, vector<1x128xf32>
    %10 = vector.broadcast %9 : vector<1x128xf32> to vector<16x128xf32>
    %11 = arith.addf %8, %10 : vector<16x128xf32>
    %12 = arith.truncf %11 : vector<16x128xf32> to vector<16x128xbf16>
    %c0_10 = arith.constant 0 : index
    %c0_11 = arith.constant 0 : index
    %c0_12 = arith.constant 0 : index
    %13 = vector.load %arg5[%c0_10, %c0_11, %c0_12] : memref<3x128x128xbf16, #tpu.memory_space<vmem>>, vector<1x128x128xbf16>
    %14 = vector.shape_cast %13 : vector<1x128x128xbf16> to vector<128x128xbf16>
    %cst_13 = arith.constant dense<0.000000e+00> : vector<16x128xf32>
    %15 = tpu.matmul %12, %14, %cst_13 {dimension_numbers = #tpu.dot_dimension_numbers<[1], [0], [0], [1], [0, 0, 1, 1], [], []>} : vector<16x128xbf16>, vector<128x128xbf16>, vector<16x128xf32> -> vector<16x128xf32>
    %cst_14 = arith.constant dense<0.000000e+00> : vector<128xf32>
    %16 = vector.multi_reduction <add>, %15, %cst_14 [0] : vector<16x128xf32> to vector<128xf32>
    %17 = vector.shape_cast %16 : vector<128xf32> to vector<1x128xf32>
    %cst_15 = arith.constant 1.600000e+01 : f32
    %18 = vector.broadcast %cst_15 : f32 to vector<1x128xf32>
    %19 = arith.divf %17, %18 : vector<1x128xf32>
    %20 = vector.broadcast %19 : vector<1x128xf32> to vector<16x128xf32>
    %21 = arith.subf %15, %20 : vector<16x128xf32>
    %22 = arith.mulf %21, %21 : vector<16x128xf32>
    %cst_16 = arith.constant dense<0.000000e+00> : vector<128xf32>
    %23 = vector.multi_reduction <add>, %22, %cst_16 [0] : vector<16x128xf32> to vector<128xf32>
    %24 = vector.shape_cast %23 : vector<128xf32> to vector<1x128xf32>
    %cst_17 = arith.constant 1.600000e+01 : f32
    %25 = vector.broadcast %cst_17 : f32 to vector<1x128xf32>
    %26 = arith.divf %24, %25 : vector<1x128xf32>
    %c0_18 = arith.constant 0 : index
    %c0_19 = arith.constant 0 : index
    %c0_20 = arith.constant 0 : index
    %27 = vector.load %arg6[%c0_18, %c0_19, %c0_20] : memref<3x1x128xf32, #tpu.memory_space<vmem>>, vector<1x1x128xf32>
    %28 = vector.shape_cast %27 : vector<1x1x128xf32> to vector<1x128xf32>
    %cst_21 = arith.constant 9.99999974E-6 : f32
    %29 = vector.broadcast %cst_21 : f32 to vector<1x128xf32>
    %30 = arith.addf %26, %29 : vector<1x128xf32>
    %31 = math.rsqrt %30 : vector<1x128xf32>
    %32 = arith.mulf %28, %31 : vector<1x128xf32>
    %33 = vector.broadcast %32 : vector<1x128xf32> to vector<16x128xf32>
    %34 = arith.mulf %21, %33 : vector<16x128xf32>
    %c0_22 = arith.constant 0 : index
    %c0_23 = arith.constant 0 : index
    %c0_24 = arith.constant 0 : index
    %35 = vector.load %arg7[%c0_22, %c0_23, %c0_24] : memref<3x1x128xf32, #tpu.memory_space<vmem>>, vector<1x1x128xf32>
    %36 = vector.shape_cast %35 : vector<1x1x128xf32> to vector<1x128xf32>
    %37 = vector.broadcast %36 : vector<1x128xf32> to vector<16x128xf32>
    %38 = arith.addf %34, %37 : vector<16x128xf32>
    %cst_25 = arith.constant 0.000000e+00 : f32
    %39 = vector.broadcast %cst_25 : f32 to vector<16x128xf32>
    %40 = arith.maximumf %38, %39 : vector<16x128xf32>
    %41 = arith.truncf %40 : vector<16x128xf32> to vector<16x128xbf16>
    %c1 = arith.constant 1 : index
    %c0_26 = arith.constant 0 : index
    %c0_27 = arith.constant 0 : index
    %42 = vector.load %arg5[%c1, %c0_26, %c0_27] : memref<3x128x128xbf16, #tpu.memory_space<vmem>>, vector<1x128x128xbf16>
    %43 = vector.shape_cast %42 : vector<1x128x128xbf16> to vector<128x128xbf16>
    %cst_28 = arith.constant dense<0.000000e+00> : vector<16x128xf32>
    %44 = tpu.matmul %41, %43, %cst_28 {dimension_numbers = #tpu.dot_dimension_numbers<[1], [0], [0], [1], [0, 0, 1, 1], [], []>} : vector<16x128xbf16>, vector<128x128xbf16>, vector<16x128xf32> -> vector<16x128xf32>
    %cst_29 = arith.constant dense<0.000000e+00> : vector<128xf32>
    %45 = vector.multi_reduction <add>, %44, %cst_29 [0] : vector<16x128xf32> to vector<128xf32>
    %46 = vector.shape_cast %45 : vector<128xf32> to vector<1x128xf32>
    %cst_30 = arith.constant 1.600000e+01 : f32
    %47 = vector.broadcast %cst_30 : f32 to vector<1x128xf32>
    %48 = arith.divf %46, %47 : vector<1x128xf32>
    %49 = vector.broadcast %48 : vector<1x128xf32> to vector<16x128xf32>
    %50 = arith.subf %44, %49 : vector<16x128xf32>
    %51 = arith.mulf %50, %50 : vector<16x128xf32>
    %cst_31 = arith.constant dense<0.000000e+00> : vector<128xf32>
    %52 = vector.multi_reduction <add>, %51, %cst_31 [0] : vector<16x128xf32> to vector<128xf32>
    %53 = vector.shape_cast %52 : vector<128xf32> to vector<1x128xf32>
    %cst_32 = arith.constant 1.600000e+01 : f32
    %54 = vector.broadcast %cst_32 : f32 to vector<1x128xf32>
    %55 = arith.divf %53, %54 : vector<1x128xf32>
    %c1_33 = arith.constant 1 : index
    %c0_34 = arith.constant 0 : index
    %c0_35 = arith.constant 0 : index
    %56 = vector.load %arg6[%c1_33, %c0_34, %c0_35] : memref<3x1x128xf32, #tpu.memory_space<vmem>>, vector<1x1x128xf32>
    %57 = vector.shape_cast %56 : vector<1x1x128xf32> to vector<1x128xf32>
    %cst_36 = arith.constant 9.99999974E-6 : f32
    %58 = vector.broadcast %cst_36 : f32 to vector<1x128xf32>
    %59 = arith.addf %55, %58 : vector<1x128xf32>
    %60 = math.rsqrt %59 : vector<1x128xf32>
    %61 = arith.mulf %57, %60 : vector<1x128xf32>
    %62 = vector.broadcast %61 : vector<1x128xf32> to vector<16x128xf32>
    %63 = arith.mulf %50, %62 : vector<16x128xf32>
    %c1_37 = arith.constant 1 : index
    %c0_38 = arith.constant 0 : index
    %c0_39 = arith.constant 0 : index
    %64 = vector.load %arg7[%c1_37, %c0_38, %c0_39] : memref<3x1x128xf32, #tpu.memory_space<vmem>>, vector<1x1x128xf32>
    %65 = vector.shape_cast %64 : vector<1x1x128xf32> to vector<1x128xf32>
    %66 = vector.broadcast %65 : vector<1x128xf32> to vector<16x128xf32>
    %67 = arith.addf %63, %66 : vector<16x128xf32>
    %cst_40 = arith.constant 0.000000e+00 : f32
    %68 = vector.broadcast %cst_40 : f32 to vector<16x128xf32>
    %69 = arith.maximumf %67, %68 : vector<16x128xf32>
    %70 = arith.truncf %69 : vector<16x128xf32> to vector<16x128xbf16>
    %c2 = arith.constant 2 : index
    %c0_41 = arith.constant 0 : index
    %c0_42 = arith.constant 0 : index
    %71 = vector.load %arg5[%c2, %c0_41, %c0_42] : memref<3x128x128xbf16, #tpu.memory_space<vmem>>, vector<1x128x128xbf16>
    %72 = vector.shape_cast %71 : vector<1x128x128xbf16> to vector<128x128xbf16>
    %cst_43 = arith.constant dense<0.000000e+00> : vector<16x128xf32>
    %73 = tpu.matmul %70, %72, %cst_43 {dimension_numbers = #tpu.dot_dimension_numbers<[1], [0], [0], [1], [0, 0, 1, 1], [], []>} : vector<16x128xbf16>, vector<128x128xbf16>, vector<16x128xf32> -> vector<16x128xf32>
    %cst_44 = arith.constant dense<0.000000e+00> : vector<128xf32>
    %74 = vector.multi_reduction <add>, %73, %cst_44 [0] : vector<16x128xf32> to vector<128xf32>
    %75 = vector.shape_cast %74 : vector<128xf32> to vector<1x128xf32>
    %cst_45 = arith.constant 1.600000e+01 : f32
    %76 = vector.broadcast %cst_45 : f32 to vector<1x128xf32>
    %77 = arith.divf %75, %76 : vector<1x128xf32>
    %78 = vector.broadcast %77 : vector<1x128xf32> to vector<16x128xf32>
    %79 = arith.subf %73, %78 : vector<16x128xf32>
    %80 = arith.mulf %79, %79 : vector<16x128xf32>
    %cst_46 = arith.constant dense<0.000000e+00> : vector<128xf32>
    %81 = vector.multi_reduction <add>, %80, %cst_46 [0] : vector<16x128xf32> to vector<128xf32>
    %82 = vector.shape_cast %81 : vector<128xf32> to vector<1x128xf32>
    %cst_47 = arith.constant 1.600000e+01 : f32
    %83 = vector.broadcast %cst_47 : f32 to vector<1x128xf32>
    %84 = arith.divf %82, %83 : vector<1x128xf32>
    %c2_48 = arith.constant 2 : index
    %c0_49 = arith.constant 0 : index
    %c0_50 = arith.constant 0 : index
    %85 = vector.load %arg6[%c2_48, %c0_49, %c0_50] : memref<3x1x128xf32, #tpu.memory_space<vmem>>, vector<1x1x128xf32>
    %86 = vector.shape_cast %85 : vector<1x1x128xf32> to vector<1x128xf32>
    %cst_51 = arith.constant 9.99999974E-6 : f32
    %87 = vector.broadcast %cst_51 : f32 to vector<1x128xf32>
    %88 = arith.addf %84, %87 : vector<1x128xf32>
    %89 = math.rsqrt %88 : vector<1x128xf32>
    %90 = arith.mulf %86, %89 : vector<1x128xf32>
    %91 = vector.broadcast %90 : vector<1x128xf32> to vector<16x128xf32>
    %92 = arith.mulf %79, %91 : vector<16x128xf32>
    %c2_52 = arith.constant 2 : index
    %c0_53 = arith.constant 0 : index
    %c0_54 = arith.constant 0 : index
    %93 = vector.load %arg7[%c2_52, %c0_53, %c0_54] : memref<3x1x128xf32, #tpu.memory_space<vmem>>, vector<1x1x128xf32>
    %94 = vector.shape_cast %93 : vector<1x1x128xf32> to vector<1x128xf32>
    %95 = vector.broadcast %94 : vector<1x128xf32> to vector<16x128xf32>
    %96 = arith.addf %92, %95 : vector<16x128xf32>
    %cst_55 = arith.constant 0.000000e+00 : f32
    %97 = vector.broadcast %cst_55 : f32 to vector<16x128xf32>
    %98 = arith.maximumf %96, %97 : vector<16x128xf32>
    %c0_56 = arith.constant 0 : index
    %c0_57 = arith.constant 0 : index
    %99 = vector.load %arg8[%c0_56, %c0_57] : memref<16x128xf32, #tpu.memory_space<vmem>>, vector<16x128xf32>
    tpu.vector_store %arg8[%c0_56, %c0_57], %98 {strides = array<i32>} : memref<16x128xf32, #tpu.memory_space<vmem>>, vector<16x128xf32>,
    return
  }
}

</mosaic_0001>

<llo_original>
// kernel: tpu_custom_call.1
$region0: #{tpu_custom_call.1}
  #allocation0 [shape = 'u32[]', space=smem, size = 0x4, offset = 0x4, fixed_abs, tag = 'smem constant byte address 0x4 - core index']
  #allocation1 [shape = 'u32[144,128]{1,0:T(1,128)}', space=vmem, size = 0x12000, scoped, tag = 'internal scratch']
  %s0 = inlined_call_operand.hbm [shape: f32[16,128], index: 0, kind: input, shape index: {}]
  %s1 = inlined_call_operand.hbm [shape: f32[16,16], index: 1, kind: input, shape index: {}]
  %s2 = inlined_call_operand.hbm [shape: bf16[128,128], index: 2, kind: input, shape index: {}]
  %s3 = inlined_call_operand.vmem [shape: bf16[16,128], index: 3, kind: input, shape index: {}]
  %s4 = inlined_call_operand.vmem [shape: f32[1,128], index: 4, kind: input, shape index: {}]
  %s5 = inlined_call_operand.hbm [shape: bf16[3,128,128], index: 5, kind: input, shape index: {}]
  %s6 = inlined_call_operand.vmem [shape: f32[3,1,128], index: 6, kind: input, shape index: {}]
  %s7 = inlined_call_operand.vmem [shape: f32[3,1,128], index: 7, kind: input, shape index: {}]
  %s8 = inlined_call_operand.hbm [shape: f32[16,128], index: 8, kind: output, shape index: {}]
  %s9 = sld [smem:[#allocation0]]
  $region58: #{tpu_custom_call.1} parent=0
    _
  %s11 = ssub.s32 1, %s9
  %s12 = scalar_select 0, %s11, %s9
  $region1: #{tpu_custom_call.1} parent=0
    #allocation2 [shape = 'u8[8192]{0}', space=vmem, size = 0x2000, scoped, tag = 'input window, operand 0, single buffered']
    #allocation3 [shape = 's32[1]{0}', space=sflag, size = 0x4, scoped, tag = 'scoped memory for tpu_custom_call.1']
    #allocation4 [shape = 's32[1]{0}', space=sflag, size = 0x4, scoped, tag = 'scoped memory for tpu_custom_call.1']
    #allocation5 [shape = 'u8[8192]{0}', space=vmem, size = 0x2000, scoped, tag = 'input window, operand 1, single buffered']
    #allocation6 [shape = 's32[1]{0}', space=sflag, size = 0x4, scoped, tag = 'scoped memory for tpu_custom_call.1']
    #allocation7 [shape = 'u8[32768]{0}', space=vmem, size = 0x8000, scoped, tag = 'input window, operand 2, single buffered']
    #allocation8 [shape = 'u8[98304]{0}', space=vmem, size = 0x18000, scoped, tag = 'input window, operand 5, single buffered']
    #allocation9 [shape = 's32[1]{0}', space=sflag, size = 0x4, scoped, tag = 'scoped memory for tpu_custom_call.1']
    #allocation10 [shape = 'u8[8192]{0}', space=vmem, size = 0x2000, scoped, tag = 'output window, operand 0, single buffered']
    %13 = vsyncpa [#allocation3], 0
    %14 = vsyncpa [#allocation6], 0
    %15 = vsyncpa [#allocation9], 0
    %16 = vsyncpa [#allocation4], 0
    // Predicated region
    $region2: #{tpu_custom_call.1} parent=1 // pred_check
      _
    $region3: #{tpu_custom_call.1} parent=1 // pred_check_branch
      %18 = sbr.rel (0) target = $region5
    $region4: #{tpu_custom_call.1} parent=1 // pred_region
      %s20 = ssub.s32 256, 256
      %21 = vsyncadd [#allocation3], %s20
      %s22 = sshll.u32 [#allocation2], 4
      %s23 = int_to_ptr.vmem [resolvable:$true] %s22
      %28 = dma.hbm_to_vmem [thread:$0]  %s0, 256, %s23, [#allocation3], 128, 128, 8
    $region5: #{tpu_custom_call.1} parent=1 // pred_fallthru
      _
    // Predicated region
    $region6: #{tpu_custom_call.1} parent=1 // pred_check
      _
    $region7: #{tpu_custom_call.1} parent=1 // pred_check_branch
      %30 = sbr.rel (0) target = $region9
    $region8: #{tpu_custom_call.1} parent=1 // pred_region
      %s32 = ssub.s32 256, 256
      %33 = vsyncadd [#allocation6], %s32
      %s34 = sshll.u32 [#allocation5], 4
      %s35 = int_to_ptr.vmem [resolvable:$true] %s34
      %40 = dma.hbm_to_vmem [thread:$0]  %s1, 256, %s35, [#allocation6], 128, 128, 8
    $region9: #{tpu_custom_call.1} parent=1 // pred_fallthru
      _
    // Predicated region
    $region10: #{tpu_custom_call.1} parent=1 // pred_check
      _
    $region11: #{tpu_custom_call.1} parent=1 // pred_check_branch
      %42 = sbr.rel (0) target = $region13
    $region12: #{tpu_custom_call.1} parent=1 // pred_region
      %s44 = ssub.s32 1024, 1024
      %45 = vsyncadd [#allocation6], %s44
      %s46 = sshll.u32 [#allocation7], 4
      %s47 = int_to_ptr.vmem [resolvable:$true] %s46
      %52 = dma.hbm_to_vmem [thread:$0]  %s2, 1024, %s47, [#allocation6], 64, 64, 4
    $region13: #{tpu_custom_call.1} parent=1 // pred_fallthru
      _
    // Predicated region
    $region14: #{tpu_custom_call.1} parent=1 // pred_check
      _
    $region15: #{tpu_custom_call.1} parent=1 // pred_check_branch
      %54 = sbr.rel (0) target = $region17
    $region16: #{tpu_custom_call.1} parent=1 // pred_region
      _
    $region17: #{tpu_custom_call.1} parent=1 // pred_fallthru
      _
    // Predicated region
    $region18: #{tpu_custom_call.1} parent=1 // pred_check
      _
    $region19: #{tpu_custom_call.1} parent=1 // pred_check_branch
      %56 = sbr.rel (0) target = $region21
    $region20: #{tpu_custom_call.1} parent=1 // pred_region
      _
    $region21: #{tpu_custom_call.1} parent=1 // pred_fallthru
      _
    // Predicated region
    $region22: #{tpu_custom_call.1} parent=1 // pred_check
      _
    $region23: #{tpu_custom_call.1} parent=1 // pred_check_branch
      %58 = sbr.rel (0) target = $region25
    $region24: #{tpu_custom_call.1} parent=1 // pred_region
      %s60 = ssub.s32 3072, 3072
      %61 = vsyncadd [#allocation9], %s60
      %s62 = sshll.u32 [#allocation8], 4
      %s63 = int_to_ptr.vmem [resolvable:$true] %s62
      %68 = dma.hbm_to_vmem [thread:$0]  %s5, 3072, %s63, [#allocation9], 64, 64, 4
    $region25: #{tpu_custom_call.1} parent=1 // pred_fallthru
      _
    // Predicated region
    $region26: #{tpu_custom_call.1} parent=1 // pred_check
      _
    $region27: #{tpu_custom_call.1} parent=1 // pred_check_branch
      %70 = sbr.rel (0) target = $region29
    $region28: #{tpu_custom_call.1} parent=1 // pred_region
      _
    $region29: #{tpu_custom_call.1} parent=1 // pred_fallthru
      _
    // Predicated region
    $region30: #{tpu_custom_call.1} parent=1 // pred_check
      _
    $region31: #{tpu_custom_call.1} parent=1 // pred_check_branch
      %72 = sbr.rel (0) target = $region33
    $region32: #{tpu_custom_call.1} parent=1 // pred_region
      _
    $region33: #{tpu_custom_call.1} parent=1 // pred_fallthru
      _
    // Predicated region
    $region34: #{tpu_custom_call.1} parent=1 // pred_check
      _
    $region35: #{tpu_custom_call.1} parent=1 // pred_check_branch
      %74 = sbr.rel (0) target = $region37
    $region36: #{tpu_custom_call.1} parent=1 // pred_region
      %75 = dma.done [#allocation3], 256
    $region37: #{tpu_custom_call.1} parent=1 // pred_fallthru
      _
    // Predicated region
    $region38: #{tpu_custom_call.1} parent=1 // pred_check
      _
    $region39: #{tpu_custom_call.1} parent=1 // pred_check_branch
      %77 = sbr.rel (0) target = $region41
    $region40: #{tpu_custom_call.1} parent=1 // pred_region
      %78 = dma.done [#allocation6], 256
    $region41: #{tpu_custom_call.1} parent=1 // pred_fallthru
      _
    // Predicated region
    $region42: #{tpu_custom_call.1} parent=1 // pred_check
      _
    $region43: #{tpu_custom_call.1} parent=1 // pred_check_branch
      %80 = sbr.rel (0) target = $region45
    $region44: #{tpu_custom_call.1} parent=1 // pred_region
      %81 = dma.done [#allocation6], 1024
    $region45: #{tpu_custom_call.1} parent=1 // pred_fallthru
      _
    // Predicated region
    $region46: #{tpu_custom_call.1} parent=1 // pred_check
      _
    $region47: #{tpu_custom_call.1} parent=1 // pred_check_branch
      %83 = sbr.rel (0) target = $region49
    $region48: #{tpu_custom_call.1} parent=1 // pred_region
      %84 = dma.done [#allocation9], 3072
    $region49: #{tpu_custom_call.1} parent=1 // pred_fallthru
      _
    %v86 = vld [vmem:[#allocation2] sm:$0xff]
    %v87 = vld [vmem:[#allocation2 + $0x8] sm:$0xff]
    %v88 = vpack.c.bf16 %v87, %v86
    %v89 = vld [vmem:[#allocation7] sm:$0xf]
    %v90 = vld [vmem:[#allocation7 + $0x4] sm:$0xf]
    %v91 = vld [vmem:[#allocation7 + $0x8] sm:$0xf]
    %v92 = vld [vmem:[#allocation7 + $0xc] sm:$0xf]
    %v93 = vld [vmem:[#allocation7 + $0x10] sm:$0xf]
    %v94 = vld [vmem:[#allocation7 + $0x14] sm:$0xf]
    %v95 = vld [vmem:[#allocation7 + $0x18] sm:$0xf]
    %v96 = vld [vmem:[#allocation7 + $0x1c] sm:$0xf]
    %v97 = vld [vmem:[#allocation7 + $0x20] sm:$0xf]
    %v98 = vld [vmem:[#allocation7 + $0x24] sm:$0xf]
    %v99 = vld [vmem:[#allocation7 + $0x28] sm:$0xf]
    %v100 = vld [vmem:[#allocation7 + $0x2c] sm:$0xf]
    %v101 = vld [vmem:[#allocation7 + $0x30] sm:$0xf]
    %v102 = vld [vmem:[#allocation7 + $0x34] sm:$0xf]
    %v103 = vld [vmem:[#allocation7 + $0x38] sm:$0xf]
    %v104 = vld [vmem:[#allocation7 + $0x3c] sm:$0xf]
    %v105 = vld [vmem:[#allocation5] sm:$0xff]
    %v106 = vld [vmem:[#allocation5 + $0x8] sm:$0xff]
    %v107 = vpack.c.bf16 %v106, %v105
    %v108 = vld [vmem:[%s3] sm:$0xf]
    %v109 = vld [vmem:[%s3 + $0x4] sm:$0xf]
    %v112 = vunpack.c.l.b16 %v108
    %v113 = vunpack.c.l.b16 %v109
    %v114 = vpack.c.b16 %v113, %v112
    %vm116 = vcmask 130048
    %v118 = vsel %vm116, %v107, 0
    %120 = vmatprep.subr.bf16.mxu0 0
    %121 = vmatpush1.bf16.msra.mxu0 %v114
    %122 = vmatprep.subr.bf16.mxu0 0
    %123 = vmatpush1.bf16.msra.mxu0 0
    %124 = vmatprep.subr.bf16.mxu0 0
    %125 = vmatpush1.bf16.msra.mxu0 0
    %126 = vmatprep.subr.bf16.mxu0 0
    %127 = vmatpush1.bf16.msra.mxu0 0
    %128 = vmatprep.subr.bf16.mxu0 0
    %129 = vmatpush1.bf16.msra.mxu0 0
    %130 = vmatprep.subr.bf16.mxu0 0
    %131 = vmatpush1.bf16.msra.mxu0 0
    %132 = vmatprep.subr.bf16.mxu0 0
    %133 = vmatpush1.bf16.msra.mxu0 0
    %134 = vmatprep.subr.bf16.mxu0 0
    %135 = vmatpush1.bf16.msra.mxu0 0
    %136 = vmatprep.subr.bf16.mxu0 0
    %137 = vmatpush1.bf16.msra.mxu0 0
    %138 = vmatprep.subr.bf16.mxu0 0
    %139 = vmatpush1.bf16.msra.mxu0 0
    %140 = vmatprep.subr.bf16.mxu0 0
    %141 = vmatpush1.bf16.msra.mxu0 0
    %142 = vmatprep.subr.bf16.mxu0 0
    %143 = vmatpush1.bf16.msra.mxu0 0
    %144 = vmatprep.subr.bf16.mxu0 0
    %145 = vmatpush1.bf16.msra.mxu0 0
    %146 = vmatprep.subr.bf16.mxu0 0
    %147 = vmatpush1.bf16.msra.mxu0 0
    %148 = vmatprep.subr.bf16.mxu0 0
    %149 = vmatpush1.bf16.msra.mxu0 0
    %150 = vmatprep.subr.bf16.mxu0 0
    %151 = vmatpush1.bf16.msra.mxu0 0
    %152 = vmatprep.mubr.bf16.mxu0 0
    %153 = vmatmul.mubr.bf16.gmra.mrb[0].mxu0 %v118
    %v154 = vpop.f32.mrb[0].mxu0
    %v155 = vadd.f32 0.0, %v154
    %v156 = vpop.f32.mrb[0].mxu0
    %v157 = vpop.f32.mrb[0].mxu0
    %v158 = vadd.f32 0.0, %v157
    %v159 = vpop.f32.mrb[0].mxu0
    %160 = vdwg.mxu0
    %v177 = vunpack.c.l.b16 %v89
    %v178 = vunpack.c.l.b16 %v90
    %v179 = vunpack.c.l.b16 %v91
    %v180 = vunpack.c.l.b16 %v92
    %v181 = vunpack.c.l.b16 %v93
    %v182 = vunpack.c.l.b16 %v94
    %v183 = vunpack.c.l.b16 %v95
    %v184 = vunpack.c.l.b16 %v96
    %v185 = vunpack.c.l.b16 %v97
    %v186 = vunpack.c.l.b16 %v98
    %v187 = vunpack.c.l.b16 %v99
    %v188 = vunpack.c.l.b16 %v100
    %v189 = vunpack.c.l.b16 %v101
    %v190 = vunpack.c.l.b16 %v102
    %v191 = vunpack.c.l.b16 %v103
    %v192 = vunpack.c.l.b16 %v104
    %v193 = vpack.c.b16 %v178, %v177
    %v194 = vpack.c.b16 %v180, %v179
    %v195 = vpack.c.b16 %v182, %v181
    %v196 = vpack.c.b16 %v184, %v183
    %v197 = vpack.c.b16 %v186, %v185
    %v198 = vpack.c.b16 %v188, %v187
    %v199 = vpack.c.b16 %v190, %v189
    %v200 = vpack.c.b16 %v192, %v191
    %209 = vmatprep.subr.bf16.mxu0 0
    %210 = vmatpush1.bf16.msra.mxu0 %v193
    %211 = vmatprep.subr.bf16.mxu0 0
    %212 = vmatpush1.bf16.msra.mxu0 %v194
    %213 = vmatprep.subr.bf16.mxu0 0
    %214 = vmatpush1.bf16.msra.mxu0 %v195
    %215 = vmatprep.subr.bf16.mxu0 0
    %216 = vmatpush1.bf16.msra.mxu0 %v196
    %217 = vmatprep.subr.bf16.mxu0 0
    %218 = vmatpush1.bf16.msra.mxu0 %v197
    %219 = vmatprep.subr.bf16.mxu0 0
    %220 = vmatpush1.bf16.msra.mxu0 %v198
    %221 = vmatprep.subr.bf16.mxu0 0
    %222 = vmatpush1.bf16.msra.mxu0 %v199
    %223 = vmatprep.subr.bf16.mxu0 0
    %224 = vmatpush1.bf16.msra.mxu0 %v200
    %225 = vmatprep.subr.bf16.mxu0 0
    %226 = vmatpush1.bf16.msra.mxu0 0
    %227 = vmatprep.subr.bf16.mxu0 0
    %228 = vmatpush1.bf16.msra.mxu0 0
    %229 = vmatprep.subr.bf16.mxu0 0
    %230 = vmatpush1.bf16.msra.mxu0 0
    %231 = vmatprep.subr.bf16.mxu0 0
    %232 = vmatpush1.bf16.msra.mxu0 0
    %233 = vmatprep.subr.bf16.mxu0 0
    %234 = vmatpush1.bf16.msra.mxu0 0
    %235 = vmatprep.subr.bf16.mxu0 0
    %236 = vmatpush1.bf16.msra.mxu0 0
    %237 = vmatprep.subr.bf16.mxu0 0
    %238 = vmatpush1.bf16.msra.mxu0 0
    %239 = vmatprep.subr.bf16.mxu0 0
    %240 = vmatpush1.bf16.msra.mxu0 0
    %241 = vmatprep.mubr.bf16.mxu0 0
    %242 = vmatmul.mubr.bf16.gmra.mrb[0].mxu0 %v88
    %v243 = vpop.f32.mrb[0].mxu0
    %v244 = vadd.f32 %v155, %v243
    %v245 = vpop.f32.mrb[0].mxu0
    %v246 = vpop.f32.mrb[0].mxu0
    %v247 = vadd.f32 %v158, %v246
    %v248 = vpop.f32.mrb[0].mxu0
    %249 = vdwg.mxu0
    %v250 = vld [vmem:[%s4] sm:$0x1]
    %v252 = vlaneseq
    %v253 = vshrl.u32 %v252, 7
    %v254 = vsub.s32 0, %v253
    %v255 = vrot.slane %v250, %v254
    %v257 = vadd.f32 %v244, %v255
    %v258 = vadd.f32 %v247, %v255
    %v259 = vpack.c.bf16 %v258, %v257
    %v260 = vld [vmem:[#allocation8] sm:$0xf]
    %v261 = vld [vmem:[#allocation8 + $0x4] sm:$0xf]
    %v262 = vld [vmem:[#allocation8 + $0x8] sm:$0xf]
    %v263 = vld [vmem:[#allocation8 + $0xc] sm:$0xf]
    %v264 = vld [vmem:[#allocation8 + $0x10] sm:$0xf]
    %v265 = vld [vmem:[#allocation8 + $0x14] sm:$0xf]
    %v266 = vld [vmem:[#allocation8 + $0x18] sm:$0xf]
    %v267 = vld [vmem:[#allocation8 + $0x1c] sm:$0xf]
    %v268 = vld [vmem:[#allocation8 + $0x20] sm:$0xf]
    %v269 = vld [vmem:[#allocation8 + $0x24] sm:$0xf]
    %v270 = vld [vmem:[#allocation8 + $0x28] sm:$0xf]
    %v271 = vld [vmem:[#allocation8 + $0x2c] sm:$0xf]
    %v272 = vld [vmem:[#allocation8 + $0x30] sm:$0xf]
    %v273 = vld [vmem:[#allocation8 + $0x34] sm:$0xf]
    %v274 = vld [vmem:[#allocation8 + $0x38] sm:$0xf]
    %v275 = vld [vmem:[#allocation8 + $0x3c] sm:$0xf]
    %v292 = vunpack.c.l.b16 %v260
    %v293 = vunpack.c.l.b16 %v261
    %v294 = vunpack.c.l.b16 %v262
    %v295 = vunpack.c.l.b16 %v263
    %v296 = vunpack.c.l.b16 %v264
    %v297 = vunpack.c.l.b16 %v265
    %v298 = vunpack.c.l.b16 %v266
    %v299 = vunpack.c.l.b16 %v267
    %v300 = vunpack.c.l.b16 %v268
    %v301 = vunpack.c.l.b16 %v269
    %v302 = vunpack.c.l.b16 %v270
    %v303 = vunpack.c.l.b16 %v271
    %v304 = vunpack.c.l.b16 %v272
    %v305 = vunpack.c.l.b16 %v273
    %v306 = vunpack.c.l.b16 %v274
    %v307 = vunpack.c.l.b16 %v275
    %v308 = vpack.c.b16 %v293, %v292
    %v309 = vpack.c.b16 %v295, %v294
    %v310 = vpack.c.b16 %v297, %v296
    %v311 = vpack.c.b16 %v299, %v298
    %v312 = vpack.c.b16 %v301, %v300
    %v313 = vpack.c.b16 %v303, %v302
    %v314 = vpack.c.b16 %v305, %v304
    %v315 = vpack.c.b16 %v307, %v306
    %324 = vmatprep.subr.bf16.mxu0 0
    %325 = vmatpush1.bf16.msra.mxu0 %v308
    %326 = vmatprep.subr.bf16.mxu0 0
    %327 = vmatpush1.bf16.msra.mxu0 %v309
    %328 = vmatprep.subr.bf16.mxu0 0
    %329 = vmatpush1.bf16.msra.mxu0 %v310
    %330 = vmatprep.subr.bf16.mxu0 0
    %331 = vmatpush1.bf16.msra.mxu0 %v311
    %332 = vmatprep.subr.bf16.mxu0 0
    %333 = vmatpush1.bf16.msra.mxu0 %v312
    %334 = vmatprep.subr.bf16.mxu0 0
    %335 = vmatpush1.bf16.msra.mxu0 %v313
    %336 = vmatprep.subr.bf16.mxu0 0
    %337 = vmatpush1.bf16.msra.mxu0 %v314
    %338 = vmatprep.subr.bf16.mxu0 0
    %339 = vmatpush1.bf16.msra.mxu0 %v315
    %340 = vmatprep.subr.bf16.mxu0 0
    %341 = vmatpush1.bf16.msra.mxu0 0
    %342 = vmatprep.subr.bf16.mxu0 0
    %343 = vmatpush1.bf16.msra.mxu0 0
    %344 = vmatprep.subr.bf16.mxu0 0
    %345 = vmatpush1.bf16.msra.mxu0 0
    %346 = vmatprep.subr.bf16.mxu0 0
    %347 = vmatpush1.bf16.msra.mxu0 0
    %348 = vmatprep.subr.bf16.mxu0 0
    %349 = vmatpush1.bf16.msra.mxu0 0
    %350 = vmatprep.subr.bf16.mxu0 0
    %351 = vmatpush1.bf16.msra.mxu0 0
    %352 = vmatprep.subr.bf16.mxu0 0
    %353 = vmatpush1.bf16.msra.mxu0 0
    %354 = vmatprep.subr.bf16.mxu0 0
    %355 = vmatpush1.bf16.msra.mxu0 0
    %356 = vmatprep.mubr.bf16.mxu0 0
    %357 = vmatmul.mubr.bf16.gmra.mrb[0].mxu0 %v259
    %v358 = vpop.f32.mrb[0].mxu0
    %v359 = vadd.f32 0.0, %v358
    %v360 = vpop.f32.mrb[0].mxu0
    %v361 = vpop.f32.mrb[0].mxu0
    %v362 = vadd.f32 0.0, %v361
    %v363 = vpop.f32.mrb[0].mxu0
    %364 = vdwg.mxu0
    %v365 = vadd.f32 %v359, %v362
    %v366 = vrot.slane %v365, 4
    %v367 = vadd.f32 %v365, %v366
    %v368 = vrot.slane %v367, 2
    %v369 = vadd.f32 %v367, %v368
    %v370 = vrot.slane %v369, 1
    %v371 = vadd.f32 %v369, %v370
    %v372 = vrcp.pop 16.0
    %v373 = vmul.f32 %v371, %v372
    %v374 = vsub.f32 %v359, %v373
    %v375 = vsub.f32 %v362, %v373
    %v376 = vmul.f32 %v374, %v374
    %v377 = vmul.f32 %v375, %v375
    %v378 = vadd.f32 %v376, %v377
    %v379 = vrot.slane %v378, 4
    %v380 = vadd.f32 %v378, %v379
    %v381 = vrot.slane %v380, 2
    %v382 = vadd.f32 %v380, %v381
    %v383 = vrot.slane %v382, 1
    %v384 = vadd.f32 %v382, %v383
    %v385 = vmul.f32 %v384, %v372
    %v386 = vld [vmem:[%s6] sm:$0x1]
    %v387 = vadd.f32 %v385, 1e-05
    %v388 = vrsqrt.pop %v387
    %v389 = vmul.f32 %v386, %v388
    %v391 = vlaneseq
    %v392 = vshrl.u32 %v391, 7
    %v393 = vsub.s32 0, %v392
    %v394 = vrot.slane %v389, %v393
    %v396 = vmul.f32 %v374, %v394
    %v397 = vmul.f32 %v375, %v394
    %v398 = vld [vmem:[%s7] sm:$0x1]
    %v400 = vlaneseq
    %v401 = vshrl.u32 %v400, 7
    %v402 = vsub.s32 0, %v401
    %v403 = vrot.slane %v398, %v402
    %v405 = vadd.f32 %v396, %v403
    %v406 = vadd.f32 %v397, %v403
    %v407 = vmax.f32 %v405, 0.0
    %v408 = vmax.f32 %v406, 0.0
    %v409 = vpack.c.bf16 %v408, %v407
    %s410 = scalar_lea.vmem [#allocation8], 64
    %v411 = vld [vmem:[%s410] sm:$0xf]
    %v412 = vld [vmem:[%s410 + $0x4] sm:$0xf]
    %v413 = vld [vmem:[%s410 + $0x8] sm:$0xf]
    %v414 = vld [vmem:[%s410 + $0xc] sm:$0xf]
    %v415 = vld [vmem:[%s410 + $0x10] sm:$0xf]
    %v416 = vld [vmem:[%s410 + $0x14] sm:$0xf]
    %v417 = vld [vmem:[%s410 + $0x18] sm:$0xf]
    %v418 = vld [vmem:[%s410 + $0x1c] sm:$0xf]
    %v419 = vld [vmem:[%s410 + $0x20] sm:$0xf]
    %v420 = vld [vmem:[%s410 + $0x24] sm:$0xf]
    %v421 = vld [vmem:[%s410 + $0x28] sm:$0xf]
    %v422 = vld [vmem:[%s410 + $0x2c] sm:$0xf]
    %v423 = vld [vmem:[%s410 + $0x30] sm:$0xf]
    %v424 = vld [vmem:[%s410 + $0x34] sm:$0xf]
    %v425 = vld [vmem:[%s410 + $0x38] sm:$0xf]
    %v426 = vld [vmem:[%s410 + $0x3c] sm:$0xf]
    %v443 = vunpack.c.l.b16 %v411
    %v444 = vunpack.c.l.b16 %v412
    %v445 = vunpack.c.l.b16 %v413
    %v446 = vunpack.c.l.b16 %v414
    %v447 = vunpack.c.l.b16 %v415
    %v448 = vunpack.c.l.b16 %v416
    %v449 = vunpack.c.l.b16 %v417
    %v450 = vunpack.c.l.b16 %v418
    %v451 = vunpack.c.l.b16 %v419
    %v452 = vunpack.c.l.b16 %v420
    %v453 = vunpack.c.l.b16 %v421
    %v454 = vunpack.c.l.b16 %v422
    %v455 = vunpack.c.l.b16 %v423
    %v456 = vunpack.c.l.b16 %v424
    %v457 = vunpack.c.l.b16 %v425
    %v458 = vunpack.c.l.b16 %v426
    %v459 = vpack.c.b16 %v444, %v443
    %v460 = vpack.c.b16 %v446, %v445
    %v461 = vpack.c.b16 %v448, %v447
    %v462 = vpack.c.b16 %v450, %v449
    %v463 = vpack.c.b16 %v452, %v451
    %v464 = vpack.c.b16 %v454, %v453
    %v465 = vpack.c.b16 %v456, %v455
    %v466 = vpack.c.b16 %v458, %v457
    %475 = vmatprep.subr.bf16.mxu0 0
    %476 = vmatpush1.bf16.msra.mxu0 %v459
    %477 = vmatprep.subr.bf16.mxu0 0
    %478 = vmatpush1.bf16.msra.mxu0 %v460
    %479 = vmatprep.subr.bf16.mxu0 0
    %480 = vmatpush1.bf16.msra.mxu0 %v461
    %481 = vmatprep.subr.bf16.mxu0 0
    %482 = vmatpush1.bf16.msra.mxu0 %v462
    %483 = vmatprep.subr.bf16.mxu0 0
    %484 = vmatpush1.bf16.msra.mxu0 %v463
    %485 = vmatprep.subr.bf16.mxu0 0
    %486 = vmatpush1.bf16.msra.mxu0 %v464
    %487 = vmatprep.subr.bf16.mxu0 0
    %488 = vmatpush1.bf16.msra.mxu0 %v465
    %489 = vmatprep.subr.bf16.mxu0 0
    %490 = vmatpush1.bf16.msra.mxu0 %v466
    %491 = vmatprep.subr.bf16.mxu0 0
    %492 = vmatpush1.bf16.msra.mxu0 0
    %493 = vmatprep.subr.bf16.mxu0 0
    %494 = vmatpush1.bf16.msra.mxu0 0
    %495 = vmatprep.subr.bf16.mxu0 0
    %496 = vmatpush1.bf16.msra.mxu0 0
    %497 = vmatprep.subr.bf16.mxu0 0
    %498 = vmatpush1.bf16.msra.mxu0 0
    %499 = vmatprep.subr.bf16.mxu0 0
    %500 = vmatpush1.bf16.msra.mxu0 0
    %501 = vmatprep.subr.bf16.mxu0 0
    %502 = vmatpush1.bf16.msra.mxu0 0
    %503 = vmatprep.subr.bf16.mxu0 0
    %504 = vmatpush1.bf16.msra.mxu0 0
    %505 = vmatprep.subr.bf16.mxu0 0
    %506 = vmatpush1.bf16.msra.mxu0 0
    %507 = vmatprep.mubr.bf16.mxu0 0
    %508 = vmatmul.mubr.bf16.gmra.mrb[0].mxu0 %v409
    %v509 = vpop.f32.mrb[0].mxu0
    %v510 = vadd.f32 0.0, %v509
    %v511 = vpop.f32.mrb[0].mxu0
    %v512 = vpop.f32.mrb[0].mxu0
    %v513 = vadd.f32 0.0, %v512
    %v514 = vpop.f32.mrb[0].mxu0
    %515 = vdwg.mxu0
    %v516 = vadd.f32 %v510, %v513
    %v517 = vrot.slane %v516, 4
    %v518 = vadd.f32 %v516, %v517
    %v519 = vrot.slane %v518, 2
    %v520 = vadd.f32 %v518, %v519
    %v521 = vrot.slane %v520, 1
    %v522 = vadd.f32 %v520, %v521
    %v523 = vmul.f32 %v522, %v372
    %v524 = vsub.f32 %v510, %v523
    %v525 = vsub.f32 %v513, %v523
    %v526 = vmul.f32 %v524, %v524
    %v527 = vmul.f32 %v525, %v525
    %v528 = vadd.f32 %v526, %v527
    %v529 = vrot.slane %v528, 4
    %v530 = vadd.f32 %v528, %v529
    %v531 = vrot.slane %v530, 2
    %v532 = vadd.f32 %v530, %v531
    %v533 = vrot.slane %v532, 1
    %v534 = vadd.f32 %v532, %v533
    %v535 = vmul.f32 %v534, %v372
    %s536 = scalar_lea.vmem %s6, 1
    %v537 = vld [vmem:[%s536] sm:$0x1]
    %v538 = vadd.f32 %v535, 1e-05
    %v539 = vrsqrt.pop %v538
    %v540 = vmul.f32 %v537, %v539
    %v542 = vlaneseq
    %v543 = vshrl.u32 %v542, 7
    %v544 = vsub.s32 0, %v543
    %v545 = vrot.slane %v540, %v544
    %v547 = vmul.f32 %v524, %v545
    %v548 = vmul.f32 %v525, %v545
    %s549 = scalar_lea.vmem %s7, 1
    %v550 = vld [vmem:[%s549] sm:$0x1]
    %v552 = vlaneseq
    %v553 = vshrl.u32 %v552, 7
    %v554 = vsub.s32 0, %v553
    %v555 = vrot.slane %v550, %v554
    %v557 = vadd.f32 %v547, %v555
    %v558 = vadd.f32 %v548, %v555
    %v559 = vmax.f32 %v557, 0.0
    %v560 = vmax.f32 %v558, 0.0
    %v561 = vpack.c.bf16 %v560, %v559
    %s562 = scalar_lea.vmem [#allocation8], 128
    %v563 = vld [vmem:[%s562] sm:$0xf]
    %v564 = vld [vmem:[%s562 + $0x4] sm:$0xf]
    %v565 = vld [vmem:[%s562 + $0x8] sm:$0xf]
    %v566 = vld [vmem:[%s562 + $0xc] sm:$0xf]
    %v567 = vld [vmem:[%s562 + $0x10] sm:$0xf]
    %v568 = vld [vmem:[%s562 + $0x14] sm:$0xf]
    %v569 = vld [vmem:[%s562 + $0x18] sm:$0xf]
    %v570 = vld [vmem:[%s562 + $0x1c] sm:$0xf]
    %v571 = vld [vmem:[%s562 + $0x20] sm:$0xf]
    %v572 = vld [vmem:[%s562 + $0x24] sm:$0xf]
    %v573 = vld [vmem:[%s562 + $0x28] sm:$0xf]
    %v574 = vld [vmem:[%s562 + $0x2c] sm:$0xf]
    %v575 = vld [vmem:[%s562 + $0x30] sm:$0xf]
    %v576 = vld [vmem:[%s562 + $0x34] sm:$0xf]
    %v577 = vld [vmem:[%s562 + $0x38] sm:$0xf]
    %v578 = vld [vmem:[%s562 + $0x3c] sm:$0xf]
    %v595 = vunpack.c.l.b16 %v563
    %v596 = vunpack.c.l.b16 %v564
    %v597 = vunpack.c.l.b16 %v565
    %v598 = vunpack.c.l.b16 %v566
    %v599 = vunpack.c.l.b16 %v567
    %v600 = vunpack.c.l.b16 %v568
    %v601 = vunpack.c.l.b16 %v569
    %v602 = vunpack.c.l.b16 %v570
    %v603 = vunpack.c.l.b16 %v571
    %v604 = vunpack.c.l.b16 %v572
    %v605 = vunpack.c.l.b16 %v573
    %v606 = vunpack.c.l.b16 %v574
    %v607 = vunpack.c.l.b16 %v575
    %v608 = vunpack.c.l.b16 %v576
    %v609 = vunpack.c.l.b16 %v577
    %v610 = vunpack.c.l.b16 %v578
    %v611 = vpack.c.b16 %v596, %v595
    %v612 = vpack.c.b16 %v598, %v597
    %v613 = vpack.c.b16 %v600, %v599
    %v614 = vpack.c.b16 %v602, %v601
    %v615 = vpack.c.b16 %v604, %v603
    %v616 = vpack.c.b16 %v606, %v605
    %v617 = vpack.c.b16 %v608, %v607
    %v618 = vpack.c.b16 %v610, %v609
    %627 = vmatprep.subr.bf16.mxu0 0
    %628 = vmatpush1.bf16.msra.mxu0 %v611
    %629 = vmatprep.subr.bf16.mxu0 0
    %630 = vmatpush1.bf16.msra.mxu0 %v612
    %631 = vmatprep.subr.bf16.mxu0 0
    %632 = vmatpush1.bf16.msra.mxu0 %v613
    %633 = vmatprep.subr.bf16.mxu0 0
    %634 = vmatpush1.bf16.msra.mxu0 %v614
    %635 = vmatprep.subr.bf16.mxu0 0
    %636 = vmatpush1.bf16.msra.mxu0 %v615
    %637 = vmatprep.subr.bf16.mxu0 0
    %638 = vmatpush1.bf16.msra.mxu0 %v616
    %639 = vmatprep.subr.bf16.mxu0 0
    %640 = vmatpush1.bf16.msra.mxu0 %v617
    %641 = vmatprep.subr.bf16.mxu0 0
    %642 = vmatpush1.bf16.msra.mxu0 %v618
    %643 = vmatprep.subr.bf16.mxu0 0
    %644 = vmatpush1.bf16.msra.mxu0 0
    %645 = vmatprep.subr.bf16.mxu0 0
    %646 = vmatpush1.bf16.msra.mxu0 0
    %647 = vmatprep.subr.bf16.mxu0 0
    %648 = vmatpush1.bf16.msra.mxu0 0
    %649 = vmatprep.subr.bf16.mxu0 0
    %650 = vmatpush1.bf16.msra.mxu0 0
    %651 = vmatprep.subr.bf16.mxu0 0
    %652 = vmatpush1.bf16.msra.mxu0 0
    %653 = vmatprep.subr.bf16.mxu0 0
    %654 = vmatpush1.bf16.msra.mxu0 0
    %655 = vmatprep.subr.bf16.mxu0 0
    %656 = vmatpush1.bf16.msra.mxu0 0
    %657 = vmatprep.subr.bf16.mxu0 0
    %658 = vmatpush1.bf16.msra.mxu0 0
    %659 = vmatprep.mubr.bf16.mxu0 0
    %660 = vmatmul.mubr.bf16.gmra.mrb[0].mxu0 %v561
    %v661 = vpop.f32.mrb[0].mxu0
    %v662 = vadd.f32 0.0, %v661
    %v663 = vpop.f32.mrb[0].mxu0
    %v664 = vpop.f32.mrb[0].mxu0
    %v665 = vadd.f32 0.0, %v664
    %v666 = vpop.f32.mrb[0].mxu0
    %667 = vdwg.mxu0
    %v668 = vadd.f32 %v662, %v665
    %v669 = vrot.slane %v668, 4
    %v670 = vadd.f32 %v668, %v669
    %v671 = vrot.slane %v670, 2
    %v672 = vadd.f32 %v670, %v671
    %v673 = vrot.slane %v672, 1
    %v674 = vadd.f32 %v672, %v673
    %v675 = vmul.f32 %v674, %v372
    %v676 = vsub.f32 %v662, %v675
    %v677 = vsub.f32 %v665, %v675
    %v678 = vmul.f32 %v676, %v676
    %v679 = vmul.f32 %v677, %v677
    %v680 = vadd.f32 %v678, %v679
    %v681 = vrot.slane %v680, 4
    %v682 = vadd.f32 %v680, %v681
    %v683 = vrot.slane %v682, 2
    %v684 = vadd.f32 %v682, %v683
    %v685 = vrot.slane %v684, 1
    %v686 = vadd.f32 %v684, %v685
    %v687 = vmul.f32 %v686, %v372
    %s688 = scalar_lea.vmem %s6, 2
    %v689 = vld [vmem:[%s688] sm:$0x1]
    %v690 = vadd.f32 %v687, 1e-05
    %v691 = vrsqrt.pop %v690
    %v692 = vmul.f32 %v689, %v691
    %v694 = vlaneseq
    %v695 = vshrl.u32 %v694, 7
    %v696 = vsub.s32 0, %v695
    %v697 = vrot.slane %v692, %v696
    %v699 = vmul.f32 %v676, %v697
    %v700 = vmul.f32 %v677, %v697
    %s701 = scalar_lea.vmem %s7, 2
    %v702 = vld [vmem:[%s701] sm:$0x1]
    %v704 = vlaneseq
    %v705 = vshrl.u32 %v704, 7
    %v706 = vsub.s32 0, %v705
    %v707 = vrot.slane %v702, %v706
    %v709 = vadd.f32 %v699, %v707
    %v710 = vadd.f32 %v700, %v707
    %v711 = vmax.f32 %v709, 0.0
    %v712 = vmax.f32 %v710, 0.0
    %713 = vst [vmem:[#allocation10] sm:$0xff] %v711
    %714 = vst [vmem:[#allocation10 + $0x8] sm:$0xff] %v712
    // Predicated region
    $region50: #{tpu_custom_call.1} parent=1 // pred_check
      _
    $region51: #{tpu_custom_call.1} parent=1 // pred_check_branch
      %716 = sbr.rel (0) target = $region53
    $region52: #{tpu_custom_call.1} parent=1 // pred_region
      %s718 = ssub.s32 256, 256
      %719 = vsyncadd [#allocation4], %s718
      %s720 = sshll.u32 [#allocation10], 4
      %s721 = int_to_ptr.vmem [resolvable:$true] %s720
      %726 = dma.vmem_to_hbm [thread:$0]  %s721, 256, %s8, [#allocation4], 128, 128, 8
    $region53: #{tpu_custom_call.1} parent=1 // pred_fallthru
      _
    // Predicated region
    $region54: #{tpu_custom_call.1} parent=1 // pred_check
      _
    $region55: #{tpu_custom_call.1} parent=1 // pred_check_branch
      %728 = sbr.rel (0) target = $region57
    $region56: #{tpu_custom_call.1} parent=1 // pred_region
      %729 = dma.done [#allocation4], 256
    $region57: #{tpu_custom_call.1} parent=1 // pred_fallthru
      _
    %730 = vsyncpa [#allocation3], 1
    %731 = vsyncpa [#allocation6], 1
    %732 = vsyncpa [#allocation9], 1
    %733 = vsyncpa [#allocation4], 1

</llo_original>
